<compile_context>
chip_gen: v7x
topology: tpu7x:2x2x1
jax: 0.10.0
libtpu: 0.0.40
codegen_flags: <defaults>
</compile_context>

<pallas_src>
import jax
import jax.numpy as jnp
from jax.experimental import pallas as pl
from jax.experimental.pallas import tpu as pltpu


# ---------------------------------------------------------------------------
# Pallas kernel: fused  (im2col-matmul  +  folded bias/BN shift  +  LeakyReLU)
# ---------------------------------------------------------------------------
def _matmul_bn_lrelu_kernel(x_ref, w_ref, shift_ref, o_ref):
    # x_ref: [TILE_M, Kp] bf16   w_ref: [Kp, OCp] bf16 (BN scale pre-folded)
    # shift_ref: [1, OCp] f32    o_ref: [TILE_M, OCp] f32
    y = jnp.dot(x_ref[...], w_ref[...], preferred_element_type=jnp.float32)
    y = y + shift_ref[...]
    o_ref[...] = jnp.where(y > 0, y, 0.01 * y).astype(o_ref.dtype)


def _round_up(x, m):
    return ((x + m - 1) // m) * m


def _fused_matmul_bn_lrelu(cols, w_fold, shift_fold):
    """cols: [M, K] f32, w_fold: [K, OC] f32 (BN scale folded), shift_fold: [OC]."""
    M, K = cols.shape
    OC = w_fold.shape[1]

    K_pad = _round_up(K, 128)
    OC_pad = _round_up(OC, 128)

    # Pick TILE_M under a conservative VMEM budget (valid on v5e/v6e/v7x):
    #   resident: weights (bf16) + shift (f32)
    #   double-buffered per block: cols rows (bf16) + output rows (f32)
    budget = 20 * 1024 * 1024
    fixed = K_pad * OC_pad * 2 + OC_pad * 4
    per_row = K_pad * 2 + OC_pad * 4
    tile_m = 128
    for cand in (1024, 512, 256, 128):
        if fixed + 2 * cand * per_row <= budget:
            tile_m = cand
            break

    M_pad8 = _round_up(M, 8)
    if M_pad8 <= tile_m:
        tile_m = M_pad8
        M_pad = M_pad8
    else:
        M_pad = _round_up(M, tile_m)

    cols_p = jnp.pad(cols.astype(jnp.bfloat16), ((0, M_pad - M), (0, K_pad - K)))
    w_p = jnp.pad(w_fold.astype(jnp.bfloat16), ((0, K_pad - K), (0, OC_pad - OC)))
    shift_p = jnp.pad(shift_fold.astype(jnp.float32), (0, OC_pad - OC)).reshape(1, OC_pad)

    grid = (M_pad // tile_m,)
    cost = pl.CostEstimate(
        flops=2 * M_pad * K_pad * OC_pad,
        transcendentals=0,
        bytes_accessed=(M_pad * K_pad * 2 + K_pad * OC_pad * 2
                        + OC_pad * 4 + M_pad * OC_pad * 4),
    )

    out = pl.pallas_call(
        _matmul_bn_lrelu_kernel,
        out_shape=jax.ShapeDtypeStruct((M_pad, OC_pad), jnp.float32),
        grid=grid,
        in_specs=[
            pl.BlockSpec((tile_m, K_pad), lambda i: (i, 0)),   # cols tile (pipelined)
            pl.BlockSpec((K_pad, OC_pad), lambda i: (0, 0)),   # weights (resident)
            pl.BlockSpec((1, OC_pad), lambda i: (0, 0)),       # shift   (resident)
        ],
        out_specs=pl.BlockSpec((tile_m, OC_pad), lambda i: (i, 0)),
        compiler_params=pltpu.CompilerParams(
            dimension_semantics=("parallel",),
            vmem_limit_bytes=32 * 1024 * 1024,
        ),
        cost_estimate=cost,
    )(cols_p, w_p, shift_p)

    return out[:M, :OC]


# ---------------------------------------------------------------------------
# Glue: im2col (patch extraction / reshapes stay in plain JAX)
# ---------------------------------------------------------------------------
def _im2col(x_nhwc, ksize, stride, pad):
    N, H, W, C = x_nhwc.shape
    xp = jnp.pad(x_nhwc, ((0, 0), (pad, pad), (pad, pad), (0, 0)))
    OH = (H + 2 * pad - ksize) // stride + 1
    OW = (W + 2 * pad - ksize) // stride + 1
    cols = []
    for kh in range(ksize):
        for kw in range(ksize):
            patch = xp[:,
                       kh:kh + (OH - 1) * stride + 1:stride,
                       kw:kw + (OW - 1) * stride + 1:stride,
                       :]
            cols.append(patch)
    cols = jnp.stack(cols, axis=3)                    # [N, OH, OW, 9, C]
    return cols.reshape(N * OH * OW, ksize * ksize * C), (N, OH, OW)


def _flatten_weight(w_oihw):
    # PyTorch conv weight [OC, IC, KH, KW] -> [KH*KW*IC, OC], matching im2col order.
    OC, IC, KH, KW = w_oihw.shape
    return jnp.transpose(w_oihw, (2, 3, 1, 0)).reshape(KH * KW * IC, OC)


def _fold_conv_bn(w_oihw, bias, gamma, beta, running_mean, running_var, eps=1e-5):
    # Fold conv bias + BN (inference) into the matmul weights and a single shift:
    #   y = (dot + b - mean) * scale + beta  ==  dot * (w*scale) + ((b-mean)*scale+beta)
    scale = gamma / jnp.sqrt(running_var + eps)
    w_mat = _flatten_weight(w_oihw) * scale[None, :]
    shift = (bias - running_mean) * scale + beta
    return w_mat, shift


# ---------------------------------------------------------------------------
# Down.forward
# ---------------------------------------------------------------------------
@jax.jit
def down_forward(x_nchw, params):
    x = jnp.transpose(x_nchw, (0, 2, 3, 1)).astype(jnp.float32)   # NCHW -> NHWC

    # conv1: k=3, pad=1, stride=2  (+ BN + LeakyReLU, fused in Pallas)
    cols1, (N, OH1, OW1) = _im2col(x, 3, 2, 1)
    w1m, sh1 = _fold_conv_bn(params["w1"], params["b1"],
                             params["bn1_gamma"], params["bn1_beta"],
                             params["bn1_mean"], params["bn1_var"])
    y1 = _fused_matmul_bn_lrelu(cols1, w1m, sh1).reshape(N, OH1, OW1, -1)

    # conv2: k=3, pad=1, stride=1  (+ BN + LeakyReLU, fused in Pallas)
    cols2, (_, OH2, OW2) = _im2col(y1, 3, 1, 1)
    w2m, sh2 = _fold_conv_bn(params["w2"], params["b2"],
                             params["bn2_gamma"], params["bn2_beta"],
                             params["bn2_mean"], params["bn2_var"])
    y2 = _fused_matmul_bn_lrelu(cols2, w2m, sh2).reshape(N, OH2, OW2, -1)

    return jnp.transpose(y2, (0, 3, 1, 2))            # NHWC -> NCHW


# ---------------------------------------------------------------------------
# Pure-JAX reference (for verification only)
# ---------------------------------------------------------------------------
def _ref_forward(x, params):
    def conv(x, w, b, stride):
        y = jax.lax.conv_general_dilated(
            x, w, window_strides=(stride, stride), padding=[(1, 1), (1, 1)],
            dimension_numbers=("NCHW", "OIHW", "NCHW"),
            precision=jax.lax.Precision.HIGHEST)
        return y + b[None, :, None, None]

    def bn_lrelu(y, g, bta, m, v):
        s = g / jnp.sqrt(v + 1e-5)
        y = (y - m[None, :, None, None]) * s[None, :, None, None] + bta[None, :, None, None]
        return jnp.where(y > 0, y, 0.01 * y)

    y = conv(x, params["w1"], params["b1"], 2)
    y = bn_lrelu(y, params["bn1_gamma"], params["bn1_beta"],
                 params["bn1_mean"], params["bn1_var"])
    y = conv(y, params["w2"], params["b2"], 1)
    y = bn_lrelu(y, params["bn2_gamma"], params["bn2_beta"],
                 params["bn2_mean"], params["bn2_var"])
    return y


# ---------------------------------------------------------------------------
# Deterministic parameter init + demo
# ---------------------------------------------------------------------------
def _init_params(key, in_channels, out_channels):
    mid = out_channels  # mid_channels defaults to out_channels
    ks = jax.random.split(key, 12)
    return {
        "w1": 0.1 * jax.random.normal(ks[0], (mid, in_channels, 3, 3), jnp.float32),
        "b1": 0.1 * jax.random.normal(ks[1], (mid,), jnp.float32),
        "bn1_gamma": 1.0 + 0.1 * jax.random.normal(ks[2], (mid,), jnp.float32),
        "bn1_beta": 0.1 * jax.random.normal(ks[3], (mid,), jnp.float32),
        "bn1_mean": 0.1 * jax.random.normal(ks[4], (mid,), jnp.float32),
        "bn1_var": jax.random.uniform(ks[5], (mid,), jnp.float32, 0.5, 1.5),
        "w2": 0.1 * jax.random.normal(ks[6], (out_channels, mid, 3, 3), jnp.float32),
        "b2": 0.1 * jax.random.normal(ks[7], (out_channels,), jnp.float32),
        "bn2_gamma": 1.0 + 0.1 * jax.random.normal(ks[8], (out_channels,), jnp.float32),
        "bn2_beta": 0.1 * jax.random.normal(ks[9], (out_channels,), jnp.float32),
        "bn2_mean": 0.1 * jax.random.normal(ks[10], (out_channels,), jnp.float32),
        "bn2_var": jax.random.uniform(ks[11], (out_channels,), jnp.float32, 0.5, 1.5),
    }


if __name__ == "__main__":
    key = jax.random.PRNGKey(0)
    k_x, k_p = jax.random.split(key)

    N, C_in, C_out, H, W = 2, 4, 8, 16, 16
    x = jax.random.normal(k_x, (N, C_in, H, W), jnp.float32)
    params = _init_params(k_p, C_in, C_out)

    out = jax.block_until_ready(down_forward(x, params))
    assert out.shape == (N, C_out, H // 2, W // 2), out.shape

    ref = jax.block_until_ready(_ref_forward(x, params))
    # bf16 MXU inputs (f32 accumulation) => slightly looser tolerance than pure f32.
    assert jnp.allclose(out, ref, atol=3e-2, rtol=3e-2), float(jnp.max(jnp.abs(out - ref)))

    print("KERNEL_OK")
</pallas_src>

<mosaic_0001>
module attributes {stable_mosaic.version = 11 : i64} {
  func.func @_matmul_bn_lrelu_kernel(%arg0: i32, %arg1: memref<128x128xbf16, #tpu.memory_space<vmem>>, %arg2: memref<128x128xbf16, #tpu.memory_space<vmem>>, %arg3: memref<1x128xf32, #tpu.memory_space<vmem>>, %arg4: memref<128x128xf32, #tpu.memory_space<vmem>>) attributes {dimension_semantics = [#tpu.dimension_semantics<parallel>], iteration_bounds = array<i64: 1>, scalar_prefetch = 0 : i64, scratch_operands = 0 : i64, tpu.core_type = #tpu.core_type<tc>, window_params = [{transform_indices = @transform_0, window_bounds = array<i64: 128, 128>}, {pipeline_mode = #tpu.pipeline_mode<synchronous>, transform_indices = @transform_1, window_bounds = array<i64: 128, 128>}, {pipeline_mode = #tpu.pipeline_mode<synchronous>, transform_indices = @transform_2, window_bounds = array<i64: 1, 128>}, {transform_indices = @transform_3, window_bounds = array<i64: 128, 128>}]} {
    %c0 = arith.constant 0 : index
    %c0_0 = arith.constant 0 : index
    %0 = vector.load %arg1[%c0, %c0_0] : memref<128x128xbf16, #tpu.memory_space<vmem>>, vector<128x128xbf16>
    %c0_1 = arith.constant 0 : index
    %c0_2 = arith.constant 0 : index
    %1 = vector.load %arg2[%c0_1, %c0_2] : memref<128x128xbf16, #tpu.memory_space<vmem>>, vector<128x128xbf16>
    %cst = arith.constant dense<0.000000e+00> : vector<128x128xf32>
    %2 = tpu.matmul %0, %1, %cst {dimension_numbers = #tpu.dot_dimension_numbers<[1], [0], [0], [1], [0, 0, 1, 1], [], []>} : vector<128x128xbf16>, vector<128x128xbf16>, vector<128x128xf32> -> vector<128x128xf32>
    %c0_3 = arith.constant 0 : index
    %c0_4 = arith.constant 0 : index
    %3 = vector.load %arg3[%c0_3, %c0_4] : memref<1x128xf32, #tpu.memory_space<vmem>>, vector<1x128xf32>
    %4 = vector.broadcast %3 : vector<1x128xf32> to vector<128x128xf32>
    %5 = arith.addf %2, %4 : vector<128x128xf32>
    %cst_5 = arith.constant 0.000000e+00 : f32
    %6 = vector.broadcast %cst_5 : f32 to vector<128x128xf32>
    %7 = arith.cmpf ogt, %5, %6 : vector<128x128xf32>
    %cst_6 = arith.constant 0.00999999977 : f32
    %8 = vector.broadcast %cst_6 : f32 to vector<128x128xf32>
    %9 = arith.mulf %8, %5 : vector<128x128xf32>
    %10 = arith.select %7, %5, %9 : vector<128x128xi1>, vector<128x128xf32>
    %c0_7 = arith.constant 0 : index
    %c0_8 = arith.constant 0 : index
    %11 = vector.load %arg4[%c0_7, %c0_8] : memref<128x128xf32, #tpu.memory_space<vmem>>, vector<128x128xf32>
    tpu.vector_store %arg4[%c0_7, %c0_8], %10 {strides = array<i32>} : memref<128x128xf32, #tpu.memory_space<vmem>>, vector<128x128xf32>,
    return
  }
  func.func @transform_0(%arg0: i32) -> (i32, i32) {
    %c0_i32 = arith.constant 0 : i32
    %c0_i32_0 = arith.constant 0 : i32
    return %arg0, %c0_i32 : i32, i32
  }
  func.func @transform_1(%arg0: i32) -> (i32, i32) {
    %c0_i32 = arith.constant 0 : i32
    %c0_i32_0 = arith.constant 0 : i32
    %c0_i32_1 = arith.constant 0 : i32
    return %c0_i32, %c0_i32_0 : i32, i32
  }
  func.func @transform_2(%arg0: i32) -> (i32, i32) {
    %c0_i32 = arith.constant 0 : i32
    %c0_i32_0 = arith.constant 0 : i32
    %c0_i32_1 = arith.constant 0 : i32
    return %c0_i32, %c0_i32_0 : i32, i32
  }
  func.func @transform_3(%arg0: i32) -> (i32, i32) {
    %c0_i32 = arith.constant 0 : i32
    %c0_i32_0 = arith.constant 0 : i32
    return %arg0, %c0_i32 : i32, i32
  }
}

</mosaic_0001>

<llo_original>
// kernel: down_forward.2
$region0: #{down_forward.2}
  #allocation0 [shape = 'u32[]', space=smem, size = 0x4, offset = 0x4, fixed_abs, tag = 'smem constant byte address 0x4 - core index']
  #allocation1 [shape = 'u32[144,128]{1,0:T(1,128)}', space=vmem, size = 0x12000, scoped, tag = 'internal scratch']
  %s0 = inlined_call_operand.vmem [shape: bf16[128,128], index: 0, kind: input, shape index: {}]
  %s1 = inlined_call_operand.vmem [shape: bf16[128,128], index: 1, kind: input, shape index: {}]
  %s2 = inlined_call_operand.vmem [shape: f32[1,128], index: 2, kind: input, shape index: {}]
  %s3 = inlined_call_operand.vmem [shape: f32[128,128], index: 3, kind: output, shape index: {}]
  %s4 = sld [smem:[#allocation0]]
  $region22: #{down_forward.2} parent=0
    _
  %s6 = ssub.s32 1, %s4
  %s7 = scalar_select 0, %s6, %s4
  // Predicated region
  $region2: #{down_forward.2} parent=0 // pred_check
    _
  $region3: #{down_forward.2} parent=0 // pred_check_branch
    %9 = sbr.rel (0) target = $region5
  $region4: #{down_forward.2} parent=0 // pred_region
    _
  $region5: #{down_forward.2} parent=0 // pred_fallthru
    _
  // Predicated region
  $region6: #{down_forward.2} parent=0 // pred_check
    _
  $region7: #{down_forward.2} parent=0 // pred_check_branch
    %11 = sbr.rel (0) target = $region9
  $region8: #{down_forward.2} parent=0 // pred_region
    _
  $region9: #{down_forward.2} parent=0 // pred_fallthru
    _
  // Predicated region
  $region10: #{down_forward.2} parent=0 // pred_check
    _
  $region11: #{down_forward.2} parent=0 // pred_check_branch
    %13 = sbr.rel (0) target = $region13
  $region12: #{down_forward.2} parent=0 // pred_region
    _
  $region13: #{down_forward.2} parent=0 // pred_fallthru
    _
  %v15 = vld [vmem:[%s0] sm:$0xf]
  %v16 = vld [vmem:[%s0 + $0x4] sm:$0xf]
  %v17 = vld [vmem:[%s0 + $0x8] sm:$0xf]
  %v18 = vld [vmem:[%s0 + $0xc] sm:$0xf]
  %v19 = vld [vmem:[%s0 + $0x10] sm:$0xf]
  %v20 = vld [vmem:[%s0 + $0x14] sm:$0xf]
  %v21 = vld [vmem:[%s0 + $0x18] sm:$0xf]
  %v22 = vld [vmem:[%s0 + $0x1c] sm:$0xf]
  %v23 = vld [vmem:[%s0 + $0x20] sm:$0xf]
  %v24 = vld [vmem:[%s0 + $0x24] sm:$0xf]
  %v25 = vld [vmem:[%s0 + $0x28] sm:$0xf]
  %v26 = vld [vmem:[%s0 + $0x2c] sm:$0xf]
  %v27 = vld [vmem:[%s0 + $0x30] sm:$0xf]
  %v28 = vld [vmem:[%s0 + $0x34] sm:$0xf]
  %v29 = vld [vmem:[%s0 + $0x38] sm:$0xf]
  %v30 = vld [vmem:[%s0 + $0x3c] sm:$0xf]
  %v31 = vld [vmem:[%s1] sm:$0xf]
  %v32 = vld [vmem:[%s1 + $0x4] sm:$0xf]
  %v33 = vld [vmem:[%s1 + $0x8] sm:$0xf]
  %v34 = vld [vmem:[%s1 + $0xc] sm:$0xf]
  %v35 = vld [vmem:[%s1 + $0x10] sm:$0xf]
  %v36 = vld [vmem:[%s1 + $0x14] sm:$0xf]
  %v37 = vld [vmem:[%s1 + $0x18] sm:$0xf]
  %v38 = vld [vmem:[%s1 + $0x1c] sm:$0xf]
  %v39 = vld [vmem:[%s1 + $0x20] sm:$0xf]
  %v40 = vld [vmem:[%s1 + $0x24] sm:$0xf]
  %v41 = vld [vmem:[%s1 + $0x28] sm:$0xf]
  %v42 = vld [vmem:[%s1 + $0x2c] sm:$0xf]
  %v43 = vld [vmem:[%s1 + $0x30] sm:$0xf]
  %v44 = vld [vmem:[%s1 + $0x34] sm:$0xf]
  %v45 = vld [vmem:[%s1 + $0x38] sm:$0xf]
  %v46 = vld [vmem:[%s1 + $0x3c] sm:$0xf]
  %v47 = vld [vmem:[%s2] sm:$0x1]
  %v49 = vlaneseq
  %v50 = vshrl.u32 %v49, 7
  %v51 = vsub.s32 0, %v50
  %v52 = vrot.slane %v47, %v51
  %v70 = vunpack.c.l.b16 %v15
  %v71 = vunpack.c.l.b16 %v16
  %v72 = vunpack.c.l.b16 %v17
  %v73 = vunpack.c.l.b16 %v18
  %v74 = vunpack.c.l.b16 %v19
  %v75 = vunpack.c.l.b16 %v20
  %v76 = vunpack.c.l.b16 %v21
  %v77 = vunpack.c.l.b16 %v22
  %v78 = vunpack.c.l.b16 %v23
  %v79 = vunpack.c.l.b16 %v24
  %v80 = vunpack.c.l.b16 %v25
  %v81 = vunpack.c.l.b16 %v26
  %v82 = vunpack.c.l.b16 %v27
  %v83 = vunpack.c.l.b16 %v28
  %v84 = vunpack.c.l.b16 %v29
  %v85 = vunpack.c.l.b16 %v30
  %v86 = vpack.c.b16 %v71, %v70
  %v87 = vpack.c.b16 %v73, %v72
  %v88 = vpack.c.b16 %v75, %v74
  %v89 = vpack.c.b16 %v77, %v76
  %v90 = vpack.c.b16 %v79, %v78
  %v91 = vpack.c.b16 %v81, %v80
  %v92 = vpack.c.b16 %v83, %v82
  %v93 = vpack.c.b16 %v85, %v84
  %v118 = vunpack.c.l.b16 %v31
  %v119 = vunpack.c.l.b16 %v32
  %v120 = vunpack.c.l.b16 %v33
  %v121 = vunpack.c.l.b16 %v34
  %v122 = vunpack.c.l.b16 %v35
  %v123 = vunpack.c.l.b16 %v36
  %v124 = vunpack.c.l.b16 %v37
  %v125 = vunpack.c.l.b16 %v38
  %v126 = vunpack.c.l.b16 %v39
  %v127 = vunpack.c.l.b16 %v40
  %v128 = vunpack.c.l.b16 %v41
  %v129 = vunpack.c.l.b16 %v42
  %v130 = vunpack.c.l.b16 %v43
  %v131 = vunpack.c.l.b16 %v44
  %v132 = vunpack.c.l.b16 %v45
  %v133 = vunpack.c.l.b16 %v46
  %v134 = vpack.c.b16 %v119, %v118
  %v135 = vpack.c.b16 %v121, %v120
  %v136 = vpack.c.b16 %v123, %v122
  %v137 = vpack.c.b16 %v125, %v124
  %v138 = vpack.c.b16 %v127, %v126
  %v139 = vpack.c.b16 %v129, %v128
  %v140 = vpack.c.b16 %v131, %v130
  %v141 = vpack.c.b16 %v133, %v132
  %150 = vmatprep.subr.bf16.mxu0 0
  %151 = vmatpush1.bf16.msra.mxu0 %v134
  %152 = vmatprep.subr.bf16.mxu0 0
  %153 = vmatpush1.bf16.msra.mxu0 %v135
  %154 = vmatprep.subr.bf16.mxu0 0
  %155 = vmatpush1.bf16.msra.mxu0 %v136
  %156 = vmatprep.subr.bf16.mxu0 0
  %157 = vmatpush1.bf16.msra.mxu0 %v137
  %158 = vmatprep.subr.bf16.mxu0 0
  %159 = vmatpush1.bf16.msra.mxu0 %v138
  %160 = vmatprep.subr.bf16.mxu0 0
  %161 = vmatpush1.bf16.msra.mxu0 %v139
  %162 = vmatprep.subr.bf16.mxu0 0
  %163 = vmatpush1.bf16.msra.mxu0 %v140
  %164 = vmatprep.subr.bf16.mxu0 0
  %165 = vmatpush1.bf16.msra.mxu0 %v141
  %166 = vmatprep.subr.bf16.mxu0 0
  %167 = vmatpush1.bf16.msra.mxu0 0
  %168 = vmatprep.subr.bf16.mxu0 0
  %169 = vmatpush1.bf16.msra.mxu0 0
  %170 = vmatprep.subr.bf16.mxu0 0
  %171 = vmatpush1.bf16.msra.mxu0 0
  %172 = vmatprep.subr.bf16.mxu0 0
  %173 = vmatpush1.bf16.msra.mxu0 0
  %174 = vmatprep.subr.bf16.mxu0 0
  %175 = vmatpush1.bf16.msra.mxu0 0
  %176 = vmatprep.subr.bf16.mxu0 0
  %177 = vmatpush1.bf16.msra.mxu0 0
  %178 = vmatprep.subr.bf16.mxu0 0
  %179 = vmatpush1.bf16.msra.mxu0 0
  %180 = vmatprep.subr.bf16.mxu0 0
  %181 = vmatpush1.bf16.msra.mxu0 0
  %182 = vmatprep.mubr.bf16.mxu0 0
  %183 = vmatmul.mubr.bf16.gmra.mrb[0].mxu0 %v86
  %v184 = vpop.f32.mrb[0].mxu0
  %v185 = vadd.f32 %v52, %v184
  %v186 = vpop.f32.mrb[0].mxu0
  %v187 = vpop.f32.mrb[0].mxu0
  %v188 = vadd.f32 %v52, %v187
  %v189 = vpop.f32.mrb[0].mxu0
  %190 = vmatprep.mubr.bf16.mxu0 0
  %191 = vmatmul.mubr.bf16.gmra.mrb[0].mxu0 %v87
  %v192 = vpop.f32.mrb[0].mxu0
  %v193 = vadd.f32 %v52, %v192
  %v194 = vpop.f32.mrb[0].mxu0
  %v195 = vpop.f32.mrb[0].mxu0
  %v196 = vadd.f32 %v52, %v195
  %v197 = vpop.f32.mrb[0].mxu0
  %198 = vmatprep.mubr.bf16.mxu0 0
  %199 = vmatmul.mubr.bf16.gmra.mrb[0].mxu0 %v88
  %v200 = vpop.f32.mrb[0].mxu0
  %v201 = vadd.f32 %v52, %v200
  %v202 = vpop.f32.mrb[0].mxu0
  %v203 = vpop.f32.mrb[0].mxu0
  %v204 = vadd.f32 %v52, %v203
  %v205 = vpop.f32.mrb[0].mxu0
  %206 = vmatprep.mubr.bf16.mxu0 0
  %207 = vmatmul.mubr.bf16.gmra.mrb[0].mxu0 %v89
  %v208 = vpop.f32.mrb[0].mxu0
  %v209 = vadd.f32 %v52, %v208
  %v210 = vpop.f32.mrb[0].mxu0
  %v211 = vpop.f32.mrb[0].mxu0
  %v212 = vadd.f32 %v52, %v211
  %v213 = vpop.f32.mrb[0].mxu0
  %214 = vmatprep.mubr.bf16.mxu0 0
  %215 = vmatmul.mubr.bf16.gmra.mrb[0].mxu0 %v90
  %v216 = vpop.f32.mrb[0].mxu0
  %v217 = vadd.f32 %v52, %v216
  %v218 = vpop.f32.mrb[0].mxu0
  %v219 = vpop.f32.mrb[0].mxu0
  %v220 = vadd.f32 %v52, %v219
  %v221 = vpop.f32.mrb[0].mxu0
  %222 = vmatprep.mubr.bf16.mxu0 0
  %223 = vmatmul.mubr.bf16.gmra.mrb[0].mxu0 %v91
  %v224 = vpop.f32.mrb[0].mxu0
  %v225 = vadd.f32 %v52, %v224
  %v226 = vpop.f32.mrb[0].mxu0
  %v227 = vpop.f32.mrb[0].mxu0
  %v228 = vadd.f32 %v52, %v227
  %v229 = vpop.f32.mrb[0].mxu0
  %230 = vmatprep.mubr.bf16.mxu0 0
  %231 = vmatmul.mubr.bf16.gmra.mrb[0].mxu0 %v92
  %v232 = vpop.f32.mrb[0].mxu0
  %v233 = vadd.f32 %v52, %v232
  %v234 = vpop.f32.mrb[0].mxu0
  %v235 = vpop.f32.mrb[0].mxu0
  %v236 = vadd.f32 %v52, %v235
  %v237 = vpop.f32.mrb[0].mxu0
  %238 = vmatprep.mubr.bf16.mxu0 0
  %239 = vmatmul.mubr.bf16.gmra.mrb[0].mxu0 %v93
  %v240 = vpop.f32.mrb[0].mxu0
  %v241 = vadd.f32 %v52, %v240
  %v242 = vpop.f32.mrb[0].mxu0
  %v243 = vpop.f32.mrb[0].mxu0
  %v244 = vadd.f32 %v52, %v243
  %v245 = vpop.f32.mrb[0].mxu0
  %246 = vdwg.mxu0
  %vm247 = vcmp.gt.f32.partialorder %v185, 0.0
  %vm248 = vcmp.gt.f32.partialorder %v188, 0.0
  %vm249 = vcmp.gt.f32.partialorder %v193, 0.0
  %vm250 = vcmp.gt.f32.partialorder %v196, 0.0
  %vm251 = vcmp.gt.f32.partialorder %v201, 0.0
  %vm252 = vcmp.gt.f32.partialorder %v204, 0.0
  %vm253 = vcmp.gt.f32.partialorder %v209, 0.0
  %vm254 = vcmp.gt.f32.partialorder %v212, 0.0
  %vm255 = vcmp.gt.f32.partialorder %v217, 0.0
  %vm256 = vcmp.gt.f32.partialorder %v220, 0.0
  %vm257 = vcmp.gt.f32.partialorder %v225, 0.0
  %vm258 = vcmp.gt.f32.partialorder %v228, 0.0
  %vm259 = vcmp.gt.f32.partialorder %v233, 0.0
  %vm260 = vcmp.gt.f32.partialorder %v236, 0.0
  %vm261 = vcmp.gt.f32.partialorder %v241, 0.0
  %vm262 = vcmp.gt.f32.partialorder %v244, 0.0
  %v263 = vmul.f32 %v185, 0.01
  %v264 = vmul.f32 %v188, 0.01
  %v265 = vmul.f32 %v193, 0.01
  %v266 = vmul.f32 %v196, 0.01
  %v267 = vmul.f32 %v201, 0.01
  %v268 = vmul.f32 %v204, 0.01
  %v269 = vmul.f32 %v209, 0.01
  %v270 = vmul.f32 %v212, 0.01
  %v271 = vmul.f32 %v217, 0.01
  %v272 = vmul.f32 %v220, 0.01
  %v273 = vmul.f32 %v225, 0.01
  %v274 = vmul.f32 %v228, 0.01
  %v275 = vmul.f32 %v233, 0.01
  %v276 = vmul.f32 %v236, 0.01
  %v277 = vmul.f32 %v241, 0.01
  %v278 = vmul.f32 %v244, 0.01
  %v279 = vsel %vm247, %v185, %v263
  %v280 = vsel %vm248, %v188, %v264
  %v281 = vsel %vm249, %v193, %v265
  %v282 = vsel %vm250, %v196, %v266
  %v283 = vsel %vm251, %v201, %v267
  %v284 = vsel %vm252, %v204, %v268
  %v285 = vsel %vm253, %v209, %v269
  %v286 = vsel %vm254, %v212, %v270
  %v287 = vsel %vm255, %v217, %v271
  %v288 = vsel %vm256, %v220, %v272
  %v289 = vsel %vm257, %v225, %v273
  %v290 = vsel %vm258, %v228, %v274
  %v291 = vsel %vm259, %v233, %v275
  %v292 = vsel %vm260, %v236, %v276
  %v293 = vsel %vm261, %v241, %v277
  %v294 = vsel %vm262, %v244, %v278
  %295 = vst [vmem:[%s3] sm:$0xff] %v279
  %296 = vst [vmem:[%s3 + $0x8] sm:$0xff] %v280
  %297 = vst [vmem:[%s3 + $0x10] sm:$0xff] %v281
  %298 = vst [vmem:[%s3 + $0x18] sm:$0xff] %v282
  %299 = vst [vmem:[%s3 + $0x20] sm:$0xff] %v283
  %300 = vst [vmem:[%s3 + $0x28] sm:$0xff] %v284
  %301 = vst [vmem:[%s3 + $0x30] sm:$0xff] %v285
  %302 = vst [vmem:[%s3 + $0x38] sm:$0xff] %v286
  %303 = vst [vmem:[%s3 + $0x40] sm:$0xff] %v287
  %304 = vst [vmem:[%s3 + $0x48] sm:$0xff] %v288
  %305 = vst [vmem:[%s3 + $0x50] sm:$0xff] %v289
  %306 = vst [vmem:[%s3 + $0x58] sm:$0xff] %v290
  %307 = vst [vmem:[%s3 + $0x60] sm:$0xff] %v291
  %308 = vst [vmem:[%s3 + $0x68] sm:$0xff] %v292
  %309 = vst [vmem:[%s3 + $0x70] sm:$0xff] %v293
  %310 = vst [vmem:[%s3 + $0x78] sm:$0xff] %v294
  // Predicated region
  $region14: #{down_forward.2} parent=0 // pred_check
    _
  $region15: #{down_forward.2} parent=0 // pred_check_branch
    %312 = sbr.rel (0) target = $region17
  $region16: #{down_forward.2} parent=0 // pred_region
    _
  $region17: #{down_forward.2} parent=0 // pred_fallthru
    _
  // Predicated region
  $region18: #{down_forward.2} parent=0 // pred_check
    _
  $region19: #{down_forward.2} parent=0 // pred_check_branch
    %314 = sbr.rel (0) target = $region21
  $region20: #{down_forward.2} parent=0 // pred_region
    _
  $region21: #{down_forward.2} parent=0 // pred_fallthru
    _

</llo_original>
